<compile_context>
chip_gen: v6e
topology: v6e:2x2x1
jax: 0.10.0
libtpu: 0.0.40
codegen_flags: <defaults>
</compile_context>

<pallas_src>
import jax
import jax.numpy as jnp
from jax.experimental import pallas as pl
from jax.experimental.pallas import tpu as pltpu


LANE = 128      # lane tiling (last dim)
SUBLANE_F32 = 8
SUBLANE_BF16 = 16


def _round_up(x, m):
    return (x + m - 1) // m * m


def mlp_kernel(x_ref, w1_ref, b1_ref, w2_ref, b2_ref, o_ref, h_ref):
    """Grid = (batch_tiles, d_out_tiles). fc1 + sigmoid is computed once per
    batch tile (at j == 0) into the VMEM scratch h_ref and reused for every
    D_out tile; fc2 runs per (i, j) tile."""

    @pl.when(pl.program_id(1) == 0)
    def _():
        # fc1 on the MXU, f32 accumulate; bias add + activation in f32.
        h = jnp.dot(x_ref[...], w1_ref[...], preferred_element_type=jnp.float32)
        h = h + b1_ref[...]
        # sigmoid(x) == 0.5 * (tanh(0.5 * x) + 1): one EUP push per element,
        # no extra exact divide on the VPU.
        h = 0.5 * (jnp.tanh(0.5 * h) + 1.0)
        h_ref[...] = h.astype(h_ref.dtype)

    # fc2 on the MXU, f32 accumulate; linear output (no activation).
    out = jnp.dot(h_ref[...], w2_ref[...], preferred_element_type=jnp.float32)
    out = out + b2_ref[...]
    o_ref[...] = out.astype(o_ref.dtype)


def prepare_params(w1, b1, w2, b2, compute_dtype=jnp.bfloat16):
    """Pad/cast the parameters once (hoisted out of the per-call hot path).

    Weights are stored [in_features, out_features] (pre-transposed vs torch).
    Only the lane dims (H, D_out) are padded to 128; D_in stays unpadded (the
    MXU handles small K fine and it keeps x HBM/DMA traffic minimal). Padded
    w1 columns are zero => padded hidden pre-activations are exactly 0, and
    the matching w2 rows are zero, so padding never leaks into the output.
    """
    D_in, H = w1.shape
    D_out = w2.shape[1]
    H_p = _round_up(H, LANE)
    D_out_p = _round_up(D_out, LANE)

    w1_p = jnp.pad(w1, ((0, 0), (0, H_p - H))).astype(compute_dtype)
    w2_p = jnp.pad(w2, ((0, H_p - H), (0, D_out_p - D_out))).astype(compute_dtype)
    # Biases stay f32: they are added to the f32 accumulator inside the kernel.
    b1_p = jnp.pad(b1, (0, H_p - H)).reshape(1, H_p).astype(jnp.float32)
    b2_p = jnp.pad(b2, (0, D_out_p - D_out)).reshape(1, D_out_p).astype(jnp.float32)

    return dict(w1=w1_p, b1=b1_p, w2=w2_p, b2=b2_p,
                d_in=D_in, d_out=D_out,
                compute_dtype=jnp.dtype(compute_dtype))


def two_layer_nn(x, params, *, block_b=512):
    """Fused forward pass: sigmoid(x @ w1 + b1) @ w2 + b2.

    x: [B, D_in] float32; params: output of prepare_params().
    """
    B, D_in = x.shape
    assert D_in == params["d_in"], "x feature dim does not match params"
    compute_dtype = params["compute_dtype"]
    w1_p, b1_p, w2_p, b2_p = params["w1"], params["b1"], params["w2"], params["b2"]
    H_p = w1_p.shape[1]
    D_out_p = w2_p.shape[1]
    D_out = params["d_out"]
    out_dtype = x.dtype

    comp_isz = compute_dtype.itemsize
    out_isz = jnp.dtype(out_dtype).itemsize
    sub = SUBLANE_BF16 if comp_isz == 2 else SUBLANE_F32

    # --- batch tile: as large as block_b allows, but guarantee >= 2 tiles so
    # the "parallel" batch axis can shard across both v7x TensorCores. -------
    TB = min(block_b, _round_up(B, sub))
    if _round_up(B, TB) // TB < 2 and B > sub:
        TB = _round_up((B + 1) // 2, sub)
    B_p = _round_up(B, TB)

    # --- D_out streaming fallback for very large layers (v7x: 64 MiB/TC). ---
    resident_w_bytes = (D_in * H_p + H_p * D_out_p) * comp_isz
    if resident_w_bytes > (24 << 20) and D_out_p > 256:
        TN = 256                      # 256-granule N tiles fill the v6e/v7x MXU
    else:
        TN = D_out_p                  # whole output width resident (common case)
    NJ = D_out_p // TN
    # TODO(synk): also stream H (with an f32 accumulator scratch) for layers
    # where w1 alone approaches the per-TC VMEM budget.

    # x: only cast + batch-pad (no D_in padding, no extra HBM pass over D_in).
    x_p = x.astype(compute_dtype)
    if B_p != B:
        x_p = jnp.pad(x_p, ((0, B_p - B), (0, 0)))

    # Resident operands (constant index_map) keep a single VMEM buffer.
    resident = pl.Buffered(buffer_count=1)
    if NJ == 1:
        w2_spec = pl.BlockSpec((H_p, TN), lambda i, j: (0, 0), pipeline_mode=resident)
        b2_spec = pl.BlockSpec((1, TN), lambda i, j: (0, 0), pipeline_mode=resident)
    else:
        w2_spec = pl.BlockSpec((H_p, TN), lambda i, j: (0, j))
        b2_spec = pl.BlockSpec((1, TN), lambda i, j: (0, j))

    # Explicit VMEM budget: tiles + single-buffered weights + h scratch,
    # with 2x headroom, clamped to [32 MiB, 64 MiB] (<= v7x per-TC physical).
    vmem_need = (
        2 * TB * D_in * comp_isz                      # x tiles (double-buffered)
        + 2 * TB * TN * out_isz                       # output tiles
        + D_in * H_p * comp_isz + H_p * 4             # w1 + b1 (single buffer)
        + (1 if NJ == 1 else 2) * (H_p * TN * comp_isz + TN * 4)  # w2 + b2
        + TB * H_p * comp_isz                         # h scratch
    )
    vmem_limit = int(min(max(2 * vmem_need + (8 << 20), 32 << 20), 64 << 20))

    grid = (B_p // TB, NJ)

    out_p = pl.pallas_call(
        mlp_kernel,
        out_shape=jax.ShapeDtypeStruct((B_p, D_out_p), out_dtype),
        grid_spec=pl.GridSpec(
            grid=grid,
            in_specs=[
                # x: batch-tiled, full (unpadded) D_in.
                pl.BlockSpec((TB, D_in), lambda i, j: (i, 0)),
                # w1 / b1: resident across all grid steps, single buffer.
                pl.BlockSpec((D_in, H_p), lambda i, j: (0, 0), pipeline_mode=resident),
                pl.BlockSpec((1, H_p), lambda i, j: (0, 0), pipeline_mode=resident),
                # w2 / b2: resident (common case) or streamed over D_out tiles.
                w2_spec,
                b2_spec,
            ],
            out_specs=pl.BlockSpec((TB, TN), lambda i, j: (i, j)),
            scratch_shapes=[pltpu.VMEM((TB, H_p), compute_dtype)],
        ),
        compiler_params=pltpu.CompilerParams(
            # batch tiles independent -> megacore sharding on v7x;
            # D_out tiles reuse the per-batch-tile h scratch -> "arbitrary".
            dimension_semantics=("parallel", "arbitrary"),
            vmem_limit_bytes=vmem_limit,
        ),
        cost_estimate=pl.CostEstimate(
            flops=int(2 * B_p * (D_in * H_p + H_p * D_out_p)),
            transcendentals=int(B_p * H_p),          # one tanh per hidden elem
            bytes_accessed=int(
                B_p * D_in * comp_isz
                + w1_p.size * comp_isz + w2_p.size * comp_isz
                + b1_p.size * 4 + b2_p.size * 4
                + B_p * D_out_p * out_isz
            ),
        ),
    )(x_p, w1_p, b1_p, w2_p, b2_p)

    # Strip padding back to the logical shape.
    return out_p[:B, :D_out]


def init_params(key, input_dim, hidden_units, output_dim, dtype=jnp.float32):
    """Deterministic init mirroring torch.nn.Linear default
    (U[-1/sqrt(fan_in), 1/sqrt(fan_in)]); weights stored as [in, out]."""
    k1, k2, k3, k4 = jax.random.split(key, 4)
    bound1 = 1.0 / jnp.sqrt(jnp.float32(input_dim))
    bound2 = 1.0 / jnp.sqrt(jnp.float32(hidden_units))
    w1 = jax.random.uniform(k1, (input_dim, hidden_units), dtype, -bound1, bound1)
    b1 = jax.random.uniform(k2, (hidden_units,), dtype, -bound1, bound1)
    w2 = jax.random.uniform(k3, (hidden_units, output_dim), dtype, -bound2, bound2)
    b2 = jax.random.uniform(k4, (output_dim,), dtype, -bound2, bound2)
    return w1, b1, w2, b2


if __name__ == "__main__":
    key = jax.random.PRNGKey(0)
    kx, kp = jax.random.split(key)

    # Batch large enough to exercise >=2 batch tiles (megacore-friendly grid).
    batch, input_dim, hidden_units, output_dim = 256, 32, 64, 16
    x = jax.random.normal(kx, (batch, input_dim), dtype=jnp.float32)
    w1, b1, w2, b2 = init_params(kp, input_dim, hidden_units, output_dim)

    # Plain-JAX reference (same semantics as the PyTorch forward).
    ref = jax.nn.sigmoid(x @ w1 + b1) @ w2 + b2

    # Exact f32-operand path (matches the f32 PyTorch module).
    params_f32 = prepare_params(w1, b1, w2, b2, compute_dtype=jnp.float32)
    out_f32 = jax.block_until_ready(two_layer_nn(x, params_f32))
    assert out_f32.shape == (batch, output_dim)
    assert jnp.allclose(out_f32, ref, atol=1e-4, rtol=1e-4)

    # Default bf16-operand / f32-accumulate path (MXU fast path on all chips).
    params_bf16 = prepare_params(w1, b1, w2, b2)   # compute_dtype=bf16 default
    out_bf16 = jax.block_until_ready(two_layer_nn(x, params_bf16))
    assert out_bf16.shape == (batch, output_dim)
    assert jnp.allclose(out_bf16, ref, atol=3e-2, rtol=3e-2)

    print("KERNEL_OK")
</pallas_src>

<mosaic_0001>
module attributes {stable_mosaic.version = 11 : i64} {
  func.func @mlp_kernel(%arg0: i32, %arg1: i32, %arg2: memref<128x32xf32, #tpu.memory_space<vmem>>, %arg3: memref<32x128xf32, #tpu.memory_space<vmem>>, %arg4: memref<1x128xf32, #tpu.memory_space<vmem>>, %arg5: memref<128x128xf32, #tpu.memory_space<vmem>>, %arg6: memref<1x128xf32, #tpu.memory_space<vmem>>, %arg7: memref<128x128xf32, #tpu.memory_space<vmem>>, %arg8: memref<128x128xf32, #tpu.memory_space<vmem>>) attributes {dimension_semantics = [#tpu.dimension_semantics<parallel>, #tpu.dimension_semantics<arbitrary>], iteration_bounds = array<i64: 2, 1>, scalar_prefetch = 0 : i64, scratch_operands = 1 : i64, tpu.core_type = #tpu.core_type<tc>, window_params = [{transform_indices = @transform_0, window_bounds = array<i64: 128, 32>}, {pipeline_mode = #tpu.pipeline_mode<synchronous>, transform_indices = @transform_1, window_bounds = array<i64: 32, 128>}, {pipeline_mode = #tpu.pipeline_mode<synchronous>, transform_indices = @transform_2, window_bounds = array<i64: 1, 128>}, {pipeline_mode = #tpu.pipeline_mode<synchronous>, transform_indices = @transform_3, window_bounds = array<i64: 128, 128>}, {pipeline_mode = #tpu.pipeline_mode<synchronous>, transform_indices = @transform_4, window_bounds = array<i64: 1, 128>}, {transform_indices = @transform_5, window_bounds = array<i64: 128, 128>}]} {
    %c0_i32 = arith.constant 0 : i32
    %0 = arith.cmpi eq, %arg1, %c0_i32 : i32
    %1 = arith.extui %0 : i1 to i32
    %c0_i32_0 = arith.constant 0 : i32
    %2 = arith.cmpi ne, %1, %c0_i32_0 : i32
    scf.if %2 {
      %c0_8 = arith.constant 0 : index
      %c0_9 = arith.constant 0 : index
      %10 = vector.load %arg2[%c0_8, %c0_9] : memref<128x32xf32, #tpu.memory_space<vmem>>, vector<128x32xf32>
      %c0_10 = arith.constant 0 : index
      %c0_11 = arith.constant 0 : index
      %11 = vector.load %arg3[%c0_10, %c0_11] : memref<32x128xf32, #tpu.memory_space<vmem>>, vector<32x128xf32>
      %cst_12 = arith.constant dense<0.000000e+00> : vector<128x128xf32>
      %12 = tpu.matmul %10, %11, %cst_12 {dimension_numbers = #tpu.dot_dimension_numbers<[1], [0], [0], [1], [0, 0, 1, 1], [], []>} : vector<128x32xf32>, vector<32x128xf32>, vector<128x128xf32> -> vector<128x128xf32>
      %c0_13 = arith.constant 0 : index
      %c0_14 = arith.constant 0 : index
      %13 = vector.load %arg4[%c0_13, %c0_14] : memref<1x128xf32, #tpu.memory_space<vmem>>, vector<1x128xf32>
      %14 = vector.broadcast %13 : vector<1x128xf32> to vector<128x128xf32>
      %15 = arith.addf %12, %14 : vector<128x128xf32>
      %cst_15 = arith.constant 5.000000e-01 : f32
      %16 = vector.broadcast %cst_15 : f32 to vector<128x128xf32>
      %17 = arith.mulf %16, %15 : vector<128x128xf32>
      %18 = math.tanh %17 : vector<128x128xf32>
      %cst_16 = arith.constant 1.000000e+00 : f32
      %19 = vector.broadcast %cst_16 : f32 to vector<128x128xf32>
      %20 = arith.addf %18, %19 : vector<128x128xf32>
      %cst_17 = arith.constant 5.000000e-01 : f32
      %21 = vector.broadcast %cst_17 : f32 to vector<128x128xf32>
      %22 = arith.mulf %21, %20 : vector<128x128xf32>
      %c0_18 = arith.constant 0 : index
      %c0_19 = arith.constant 0 : index
      %23 = vector.load %arg8[%c0_18, %c0_19] : memref<128x128xf32, #tpu.memory_space<vmem>>, vector<128x128xf32>
      tpu.vector_store %arg8[%c0_18, %c0_19], %22 {strides = array<i32>} : memref<128x128xf32, #tpu.memory_space<vmem>>, vector<128x128xf32>,
    } else {
    }
    %c0 = arith.constant 0 : index
    %c0_1 = arith.constant 0 : index
    %3 = vector.load %arg8[%c0, %c0_1] : memref<128x128xf32, #tpu.memory_space<vmem>>, vector<128x128xf32>
    %c0_2 = arith.constant 0 : index
    %c0_3 = arith.constant 0 : index
    %4 = vector.load %arg5[%c0_2, %c0_3] : memref<128x128xf32, #tpu.memory_space<vmem>>, vector<128x128xf32>
    %cst = arith.constant dense<0.000000e+00> : vector<128x128xf32>
    %5 = tpu.matmul %3, %4, %cst {dimension_numbers = #tpu.dot_dimension_numbers<[1], [0], [0], [1], [0, 0, 1, 1], [], []>} : vector<128x128xf32>, vector<128x128xf32>, vector<128x128xf32> -> vector<128x128xf32>
    %c0_4 = arith.constant 0 : index
    %c0_5 = arith.constant 0 : index
    %6 = vector.load %arg6[%c0_4, %c0_5] : memref<1x128xf32, #tpu.memory_space<vmem>>, vector<1x128xf32>
    %7 = vector.broadcast %6 : vector<1x128xf32> to vector<128x128xf32>
    %8 = arith.addf %5, %7 : vector<128x128xf32>
    %c0_6 = arith.constant 0 : index
    %c0_7 = arith.constant 0 : index
    %9 = vector.load %arg7[%c0_6, %c0_7] : memref<128x128xf32, #tpu.memory_space<vmem>>, vector<128x128xf32>
    tpu.vector_store %arg7[%c0_6, %c0_7], %8 {strides = array<i32>} : memref<128x128xf32, #tpu.memory_space<vmem>>, vector<128x128xf32>,
    return
  }
  func.func @transform_0(%arg0: i32, %arg1: i32) -> (i32, i32) {
    %c0_i32 = arith.constant 0 : i32
    %c0_i32_0 = arith.constant 0 : i32
    return %arg0, %c0_i32 : i32, i32
  }
  func.func @transform_1(%arg0: i32, %arg1: i32) -> (i32, i32) {
    %c0_i32 = arith.constant 0 : i32
    %c0_i32_0 = arith.constant 0 : i32
    %c0_i32_1 = arith.constant 0 : i32
    return %c0_i32, %c0_i32_0 : i32, i32
  }
  func.func @transform_2(%arg0: i32, %arg1: i32) -> (i32, i32) {
    %c0_i32 = arith.constant 0 : i32
    %c0_i32_0 = arith.constant 0 : i32
    %c0_i32_1 = arith.constant 0 : i32
    return %c0_i32, %c0_i32_0 : i32, i32
  }
  func.func @transform_3(%arg0: i32, %arg1: i32) -> (i32, i32) {
    %c0_i32 = arith.constant 0 : i32
    %c0_i32_0 = arith.constant 0 : i32
    %c0_i32_1 = arith.constant 0 : i32
    return %c0_i32, %c0_i32_0 : i32, i32
  }
  func.func @transform_4(%arg0: i32, %arg1: i32) -> (i32, i32) {
    %c0_i32 = arith.constant 0 : i32
    %c0_i32_0 = arith.constant 0 : i32
    %c0_i32_1 = arith.constant 0 : i32
    return %c0_i32, %c0_i32_0 : i32, i32
  }
  func.func @transform_5(%arg0: i32, %arg1: i32) -> (i32, i32) {
    %c0_i32 = arith.constant 0 : i32
    return %arg0, %arg1 : i32, i32
  }
}

</mosaic_0001>

<llo_original>
// kernel: tpu_custom_call.1
$region0: #{tpu_custom_call.1}
  #allocation0 [shape = 'u32[]', space=smem, size = 0x4, offset = 0x4, fixed_abs, tag = 'smem constant byte address 0x4 - core index']
  #allocation1 [shape = 'u32[144,128]{1,0:T(1,128)}', space=vmem, size = 0x12000, scoped, tag = 'internal scratch']
  #allocation2 [shape = 'f32[128,128]{1,0:T(8,128)}', space=vmem, size = 0x10000, scoped, tag = 'scratch operand']
  %s0 = inlined_call_operand.vmem [shape: f32[256,32], index: 0, kind: input, shape index: {}]
  %s1 = inlined_call_operand.vmem [shape: f32[32,128], index: 1, kind: input, shape index: {}]
  %s2 = inlined_call_operand.vmem [shape: f32[1,128], index: 2, kind: input, shape index: {}]
  %s3 = inlined_call_operand.vmem [shape: f32[128,128], index: 3, kind: input, shape index: {}]
  %s4 = inlined_call_operand.vmem [shape: f32[1,128], index: 4, kind: input, shape index: {}]
  %s5 = inlined_call_operand.hbm [shape: f32[256,128], index: 5, kind: output, shape index: {}]
  %s6 = sld [smem:[#allocation0]]
  $region57: #{tpu_custom_call.1} parent=0
    _
  %s8 = ssub.s32 1, %s6
  %s9 = scalar_select 0, %s8, %s6
  $region1: #{tpu_custom_call.1} parent=0
    #allocation3 [shape = 'u8[131072]{0}', space=vmem, size = 0x20000, scoped, tag = 'output window, operand 0']
    #allocation4 [shape = 's32[2]{0}', space=sflag, size = 0x8, scoped, tag = 'scoped memory for tpu_custom_call.1']
    %10 = vsyncpa [#allocation4], 0
    %s11 = scalar_lea.sflag [#allocation4], 1
    %12 = vsyncpa %s11, 0
    loop: start=0, step=1, limit=4
    $region2: #{tpu_custom_call.1} parent=1 // loop_pre_header
      _
    $region3: #{tpu_custom_call.1} parent=1 // loop_header
      %s14 = sphi 0, %s18
      %p15 = scmp.ge.s32.totalorder %s14, 4
      %s21 = sphi 0, %s33
      %s22 = sphi 0, %s29
      %s23 = sphi 0, %s21
      %s24 = sphi 0, %s22
      %s25 = sphi 0, %s23
      %s26 = sphi 0, %s24
      %s36 = sphi 0, %s38
      %s39 = sphi 0, %s36
      %s40 = sphi 0, %s39
      %s56 = sphi 0, %s40
      %s60 = sphi 0, %s60
      %s62 = sphi 0, %s60
      %s63 = sphi 0, %s62
      %s77 = sphi 0, %s63
      %s81 = sphi 0, %s81
      %s83 = sphi 0, %s81
      %s84 = sphi 0, %s83
      %s98 = sphi 0, %s84
      %s102 = sphi 0, %s102
      %s104 = sphi 0, %s102
      %s105 = sphi 0, %s104
      %s119 = sphi 0, %s105
      %s123 = sphi 0, %s123
      %s125 = sphi 0, %s123
      %s126 = sphi 0, %s125
      %s140 = sphi 0, %s126
      %s148 = sphi 0, %s150
      %s151 = sphi 0, %s148
      %s152 = sphi 0, %s151
      %s168 = sphi 0, %s152
    $region4: #{tpu_custom_call.1} parent=1 // loop_header_branch
      %17 = sbr.rel (%p15) target = $region8
    $region5: #{tpu_custom_call.1} parent=1 // loop_body
      %s19 = ssub.s32 %s14, 1
      %s20 = ssub.s32 %s14, 2
      %s27 = sadd.s32 1, %s22
      %p28 = scmp.ge.s32.totalorder %s27, 1
      %s29 = scalar_select %p28, 0, %s27
      %s30 = sadd.s32 1, %s21
      %s31 = scalar_select %p28, %s30, %s21
      %p32 = scmp.ge.s32.totalorder %s31, 2
      %s33 = scalar_select %p32, 0, %s31
      %s34 = ssub.s32 %s21, %s33
      %p35 = scmp.eq.s32.totalorder %s34, 0
      %s37 = sadd.s32 %s36, 1
      %s38 = scalar_select %p35, %s36, %s37
      %p41 = pneg %p35
      %p42 = scmp.eq.s32.totalorder %s14, 1
      %p43 = por %p41, %p42
      %p44 = scmp.ne.s32.totalorder %s36, %s39
      %p45 = scmp.eq.s32.totalorder %s14, 0
      %p46 = por %p44, %p45
      %p47 = scmp.ne.s32.totalorder %s36, %s39
      %p48 = scmp.eq.s32.totalorder %s19, 1
      %p49 = por %p47, %p48
      %p50 = scmp.ne.s32.totalorder %s39, %s40
      %p51 = scmp.eq.s32.totalorder %s19, 0
      %p52 = por %p50, %p51
      %p53 = scmp.ne.s32.totalorder %s39, %s40
      %p54 = scmp.eq.s32.totalorder %s20, 1
      %p55 = por %p53, %p54
      %p57 = scmp.ne.s32.totalorder %s40, %s56
      %p58 = scmp.eq.s32.totalorder %s20, 0
      %p59 = por %p57, %p58
      %s61 = sadd.s32 %s60, 1
      %p64 = scmp.eq.s32.totalorder %s14, 1
      %p65 = scmp.ne.s32.totalorder %s60, %s62
      %p66 = scmp.eq.s32.totalorder %s14, 0
      %p67 = por %p65, %p66
      %p68 = scmp.ne.s32.totalorder %s60, %s62
      %p69 = scmp.eq.s32.totalorder %s19, 1
      %p70 = por %p68, %p69
      %p71 = scmp.ne.s32.totalorder %s62, %s63
      %p72 = scmp.eq.s32.totalorder %s19, 0
      %p73 = por %p71, %p72
      %p74 = scmp.ne.s32.totalorder %s62, %s63
      %p75 = scmp.eq.s32.totalorder %s20, 1
      %p76 = por %p74, %p75
      %p78 = scmp.ne.s32.totalorder %s63, %s77
      %p79 = scmp.eq.s32.totalorder %s20, 0
      %p80 = por %p78, %p79
      %s82 = sadd.s32 %s81, 1
      %p85 = scmp.eq.s32.totalorder %s14, 1
      %p86 = scmp.ne.s32.totalorder %s81, %s83
      %p87 = scmp.eq.s32.totalorder %s14, 0
      %p88 = por %p86, %p87
      %p89 = scmp.ne.s32.totalorder %s81, %s83
      %p90 = scmp.eq.s32.totalorder %s19, 1
      %p91 = por %p89, %p90
      %p92 = scmp.ne.s32.totalorder %s83, %s84
      %p93 = scmp.eq.s32.totalorder %s19, 0
      %p94 = por %p92, %p93
      %p95 = scmp.ne.s32.totalorder %s83, %s84
      %p96 = scmp.eq.s32.totalorder %s20, 1
      %p97 = por %p95, %p96
      %p99 = scmp.ne.s32.totalorder %s84, %s98
      %p100 = scmp.eq.s32.totalorder %s20, 0
      %p101 = por %p99, %p100
      %s103 = sadd.s32 %s102, 1
      %p106 = scmp.eq.s32.totalorder %s14, 1
      %p107 = scmp.ne.s32.totalorder %s102, %s104
      %p108 = scmp.eq.s32.totalorder %s14, 0
      %p109 = por %p107, %p108
      %p110 = scmp.ne.s32.totalorder %s102, %s104
      %p111 = scmp.eq.s32.totalorder %s19, 1
      %p112 = por %p110, %p111
      %p113 = scmp.ne.s32.totalorder %s104, %s105
      %p114 = scmp.eq.s32.totalorder %s19, 0
      %p115 = por %p113, %p114
      %p116 = scmp.ne.s32.totalorder %s104, %s105
      %p117 = scmp.eq.s32.totalorder %s20, 1
      %p118 = por %p116, %p117
      %p120 = scmp.ne.s32.totalorder %s105, %s119
      %p121 = scmp.eq.s32.totalorder %s20, 0
      %p122 = por %p120, %p121
      %s124 = sadd.s32 %s123, 1
      %p127 = scmp.eq.s32.totalorder %s14, 1
      %p128 = scmp.ne.s32.totalorder %s123, %s125
      %p129 = scmp.eq.s32.totalorder %s14, 0
      %p130 = por %p128, %p129
      %p131 = scmp.ne.s32.totalorder %s123, %s125
      %p132 = scmp.eq.s32.totalorder %s19, 1
      %p133 = por %p131, %p132
      %p134 = scmp.ne.s32.totalorder %s125, %s126
      %p135 = scmp.eq.s32.totalorder %s19, 0
      %p136 = por %p134, %p135
      %p137 = scmp.ne.s32.totalorder %s125, %s126
      %p138 = scmp.eq.s32.totalorder %s20, 1
      %p139 = por %p137, %p138
      %p141 = scmp.ne.s32.totalorder %s126, %s140
      %p142 = scmp.eq.s32.totalorder %s20, 0
      %p143 = por %p141, %p142
      %s144 = ssub.s32 %s21, %s33
      %s145 = ssub.s32 %s22, %s29
      %s146 = sor.u32 %s144, %s145
      %p147 = scmp.eq.s32.totalorder %s146, 0
      %s149 = sadd.s32 %s148, 1
      %s150 = scalar_select %p147, %s148, %s149
      %p153 = pneg %p147
      %p154 = scmp.eq.s32.totalorder %s14, 1
      %p155 = por %p153, %p154
      %p156 = scmp.ne.s32.totalorder %s148, %s151
      %p157 = scmp.eq.s32.totalorder %s14, 0
      %p158 = por %p156, %p157
      %p159 = scmp.ne.s32.totalorder %s148, %s151
      %p160 = scmp.eq.s32.totalorder %s19, 1
      %p161 = por %p159, %p160
      %p162 = scmp.ne.s32.totalorder %s151, %s152
      %p163 = scmp.eq.s32.totalorder %s19, 0
      %p164 = por %p162, %p163
      %p165 = scmp.ne.s32.totalorder %s151, %s152
      %p166 = scmp.eq.s32.totalorder %s20, 1
      %p167 = por %p165, %p166
      %p169 = scmp.ne.s32.totalorder %s152, %s168
      %p170 = scmp.eq.s32.totalorder %s20, 0
      %p171 = por %p169, %p170
      %p172 = scmp.le.s32.totalorder 1, %s14
      %p173 = scmp.lt.s32.totalorder %s14, 3
      %p174 = pnand %p172, %p173
      %p175 = pneg %p174
      // Predicated region
      $region9: #{tpu_custom_call.1} parent=5 // pred_check
        _
      $region10: #{tpu_custom_call.1} parent=5 // pred_check_branch
        %177 = sbr.rel (%p174) target = $region12
      $region11: #{tpu_custom_call.1} parent=5 // pred_region
        %s178 = ssub.s32 %s14, 1
        // Predicated region
        $region13: #{tpu_custom_call.1} parent=11 // pred_check
          %p179 = pneg %p73
        $region14: #{tpu_custom_call.1} parent=11 // pred_check_branch
          %181 = sbr.rel (%p179) target = $region16
        $region15: #{tpu_custom_call.1} parent=11 // pred_region
          _
        $region16: #{tpu_custom_call.1} parent=11 // pred_fallthru
          _
        // Predicated region
        $region17: #{tpu_custom_call.1} parent=11 // pred_check
          %p182 = pneg %p94
        $region18: #{tpu_custom_call.1} parent=11 // pred_check_branch
          %184 = sbr.rel (%p182) target = $region20
        $region19: #{tpu_custom_call.1} parent=11 // pred_region
          _
        $region20: #{tpu_custom_call.1} parent=11 // pred_fallthru
          _
        // Predicated region
        $region21: #{tpu_custom_call.1} parent=11 // pred_check
          %p185 = pneg %p115
        $region22: #{tpu_custom_call.1} parent=11 // pred_check_branch
          %187 = sbr.rel (%p185) target = $region24
        $region23: #{tpu_custom_call.1} parent=11 // pred_region
          _
        $region24: #{tpu_custom_call.1} parent=11 // pred_fallthru
          _
        // Predicated region
        $region25: #{tpu_custom_call.1} parent=11 // pred_check
          %p188 = pneg %p136
        $region26: #{tpu_custom_call.1} parent=11 // pred_check_branch
          %190 = sbr.rel (%p188) target = $region28
        $region27: #{tpu_custom_call.1} parent=11 // pred_region
          _
        $region28: #{tpu_custom_call.1} parent=11 // pred_fallthru
          _
      $region12: #{tpu_custom_call.1} parent=5 // pred_fallthru
        _
      %p191 = scmp.lt.s32.totalorder %s14, 2
      // Predicated region
      $region29: #{tpu_custom_call.1} parent=5 // pred_check
        %p192 = pneg %p191
      $region30: #{tpu_custom_call.1} parent=5 // pred_check_branch
        %194 = sbr.rel (%p192) target = $region32
      $region31: #{tpu_custom_call.1} parent=5 // pred_region
        // Predicated region
        $region33: #{tpu_custom_call.1} parent=31 // pred_check
          %p195 = pneg %p46
        $region34: #{tpu_custom_call.1} parent=31 // pred_check_branch
          %197 = sbr.rel (%p195) target = $region36
        $region35: #{tpu_custom_call.1} parent=31 // pred_region
          %s198 = smul.u32 16, %s21
          %p199 = scmp.lt.s32.totalorder %s198, 31
          %s200 = scalar_select %p199, %s198, 31
          %s201 = smul.addr %s200, 8
          %s202 = scalar_lea.vmem %s0, %s201
          %s203 = smul.u32 16, %s21
        $region36: #{tpu_custom_call.1} parent=31 // pred_fallthru
          _
      $region32: #{tpu_custom_call.1} parent=5 // pred_fallthru
        _
      %p204 = scmp.le.s32.totalorder 1, %s14
      %p205 = scmp.lt.s32.totalorder %s14, 3
      %p206 = pnand %p204, %p205
      %p207 = pneg %p206
      // Predicated region
      $region37: #{tpu_custom_call.1} parent=5 // pred_check
        _
      $region38: #{tpu_custom_call.1} parent=5 // pred_check_branch
        %209 = sbr.rel (%p206) target = $region40
      $region39: #{tpu_custom_call.1} parent=5 // pred_region
        %s210 = ssub.s32 %s14, 1
        %s211 = smul.u32 16, %s23
        %p212 = scmp.lt.s32.totalorder %s211, 31
        %s213 = scalar_select %p212, %s211, 31
        %s214 = smul.addr %s213, 8
        %s215 = scalar_lea.vmem %s0, %s214
        %p216 = pneg %p52
        %p217 = pneg %p49
        %p218 = pneg %p73
        %p219 = pneg %p70
        %p220 = pneg %p94
        %p221 = pneg %p91
        %p222 = pneg %p115
        %p223 = pneg %p112
        %p224 = pneg %p136
        %p225 = pneg %p133
        %p226 = pneg %p164
        %p227 = pneg %p161
        %s228 = sand.u32 %s151, 1
        %s229 = scalar_lea.sflag [#allocation4], %s228
        %s230 = sand.u32 %s151, 1
        %s231 = smul.addr %s230, 128
        %s232 = scalar_lea.vmem [#allocation3], %s231
        %s233 = smul.u32 16, %s23
        %p234 = scmp.lt.s32.totalorder %s233, 31
        %s235 = scalar_select %p234, %s233, 31
        %s236 = smul.addr %s235, 8
        %s237 = scalar_lea.vmem %s0, %s236
        %s238 = smul.u32 16, %s23
        %s239 = smul.u32 16, %s23
        %p240 = scmp.eq.s32.totalorder %s24, 0
        // Predicated region
        $region41: #{tpu_custom_call.1} parent=39 // pred_check
          %p241 = pneg %p240
        $region42: #{tpu_custom_call.1} parent=39 // pred_check_branch
          %243 = sbr.rel (%p241) target = $region44
        $region43: #{tpu_custom_call.1} parent=39 // pred_region
          %v244 = vld [vmem:[%s237] sm:$0xff]
          %v245 = vld [vmem:[%s237 + $0x8] sm:$0xff]
          %v246 = vld [vmem:[%s237 + $0x10] sm:$0xff]
          %v247 = vld [vmem:[%s237 + $0x18] sm:$0xff]
          %v248 = vld [vmem:[%s237 + $0x20] sm:$0xff]
          %v249 = vld [vmem:[%s237 + $0x28] sm:$0xff]
          %v250 = vld [vmem:[%s237 + $0x30] sm:$0xff]
          %v251 = vld [vmem:[%s237 + $0x38] sm:$0xff]
          %v252 = vld [vmem:[%s237 + $0x40] sm:$0xff]
          %v253 = vld [vmem:[%s237 + $0x48] sm:$0xff]
          %v254 = vld [vmem:[%s237 + $0x50] sm:$0xff]
          %v255 = vld [vmem:[%s237 + $0x58] sm:$0xff]
          %v256 = vld [vmem:[%s237 + $0x60] sm:$0xff]
          %v257 = vld [vmem:[%s237 + $0x68] sm:$0xff]
          %v258 = vld [vmem:[%s237 + $0x70] sm:$0xff]
          %v259 = vld [vmem:[%s237 + $0x78] sm:$0xff]
          %v260 = vld [vmem:[%s1] sm:$0xff]
          %v261 = vld [vmem:[%s1 + $0x8] sm:$0xff]
          %v262 = vld [vmem:[%s1 + $0x10] sm:$0xff]
          %v263 = vld [vmem:[%s1 + $0x18] sm:$0xff]
          %v264 = vld [vmem:[%s2] sm:$0x1]
          %v266 = vlaneseq
          %v267 = vshrl.u32 %v266, 7
          %v268 = vsub.s32 0, %v267
          %v269 = vrot.slane %v264, %v268
          %vm271 = vcmask 261120
          %v273 = vsel %vm271, %v244, 0
          %v276 = vsel %vm271, %v245, 0
          %v279 = vsel %vm271, %v246, 0
          %v282 = vsel %vm271, %v247, 0
          %v285 = vsel %vm271, %v248, 0
          %v288 = vsel %vm271, %v249, 0
          %v291 = vsel %vm271, %v250, 0
          %v294 = vsel %vm271, %v251, 0
          %v297 = vsel %vm271, %v252, 0
          %v300 = vsel %vm271, %v253, 0
          %v303 = vsel %vm271, %v254, 0
          %v306 = vsel %vm271, %v255, 0
          %v309 = vsel %vm271, %v256, 0
          %v312 = vsel %vm271, %v257, 0
          %v315 = vsel %vm271, %v258, 0
          %v318 = vsel %vm271, %v259, 0
          %320 = vmatprep.subr.mxu0 0.0
          %321 = vmatpush1.msra.mxu0 0.0
          %322 = vmatprep.subr.mxu0 0.0
          %323 = vmatpush1.msra.mxu0 0.0
          %324 = vmatprep.subr.mxu0 0.0
          %325 = vmatpush1.msra.mxu0 0.0
          %326 = vmatprep.subr.mxu0 0.0
          %327 = vmatpush1.msra.mxu0 0.0
          %328 = vmatprep.subr.mxu0 0.0
          %329 = vmatpush1.msra.mxu0 0.0
          %330 = vmatprep.subr.mxu0 0.0
          %331 = vmatpush1.msra.mxu0 0.0
          %332 = vmatprep.subr.mxu0 0.0
          %333 = vmatpush1.msra.mxu0 0.0
          %334 = vmatprep.subr.mxu0 0.0
          %335 = vmatpush1.msra.mxu0 0.0
          %336 = vmatprep.subr.mxu0 0.0
          %337 = vmatpush1.msra.mxu0 0.0
          %338 = vmatprep.subr.mxu0 0.0
          %339 = vmatpush1.msra.mxu0 0.0
          %340 = vmatprep.subr.mxu0 0.0
          %341 = vmatpush1.msra.mxu0 0.0
          %342 = vmatprep.subr.mxu0 0.0
          %343 = vmatpush1.msra.mxu0 0.0
          %344 = vmatprep.subr.mxu0 0.0
          %345 = vmatpush1.msra.mxu0 %v263
          %346 = vmatprep.subr.mxu0 0.0
          %347 = vmatpush1.msra.mxu0 %v262
          %348 = vmatprep.subr.mxu0 0.0
          %349 = vmatpush1.msra.mxu0 %v261
          %350 = vmatprep.subr.mxu0 0.0
          %351 = vmatpush1.msra.mxu0 %v260
          %352 = vmatprep.subr.mxu0 0.0
          %353 = vmatpush2.msra.mxu0 0.0
          %354 = vmatprep.subr.mxu0 0.0
          %355 = vmatpush2.msra.mxu0 0.0
          %356 = vmatprep.subr.mxu0 0.0
          %357 = vmatpush2.msra.mxu0 0.0
          %358 = vmatprep.subr.mxu0 0.0
          %359 = vmatpush2.msra.mxu0 0.0
          %360 = vmatprep.subr.mxu0 0.0
          %361 = vmatpush2.msra.mxu0 0.0
          %362 = vmatprep.subr.mxu0 0.0
          %363 = vmatpush2.msra.mxu0 0.0
          %364 = vmatprep.subr.mxu0 0.0
          %365 = vmatpush2.msra.mxu0 0.0
          %366 = vmatprep.subr.mxu0 0.0
          %367 = vmatpush2.msra.mxu0 0.0
          %368 = vmatprep.subr.mxu0 0.0
          %369 = vmatpush2.msra.mxu0 0.0
          %370 = vmatprep.subr.mxu0 0.0
          %371 = vmatpush2.msra.mxu0 0.0
          %372 = vmatprep.subr.mxu0 0.0
          %373 = vmatpush2.msra.mxu0 0.0
          %374 = vmatprep.subr.mxu0 0.0
          %375 = vmatpush2.msra.mxu0 0.0
          %376 = vmatprep.subr.mxu0 0.0
          %377 = vmatpush2.msra.mxu0 0.0
          %378 = vmatprep.subr.mxu0 0.0
          %379 = vmatpush2.msra.mxu0 0.0
          %380 = vmatprep.subr.mxu0 0.0
          %381 = vmatpush2.msra.mxu0 0.0
          %382 = vmatprep.subr.mxu0 0.0
          %383 = vmatpush2.msra.mxu0 0.0
          %384 = vmatprep.mubr.f32.mxu0 0.0
          %385 = vmatmul.mubr.f32.gmra.mxu0 %v273
          %v386 = vpop.f32.mrf.mxu0
          %v387 = vadd.f32 %v269, %v386
          %v388 = vpop.f32.mrf.mxu0
          %389 = vmatprep.mubr.f32.mxu0 0.0
          %390 = vmatmul.mubr.f32.gmra.mxu0 %v276
          %v391 = vpop.f32.mrf.mxu0
          %v392 = vadd.f32 %v269, %v391
          %v393 = vpop.f32.mrf.mxu0
          %394 = vmatprep.mubr.f32.mxu0 0.0
          %395 = vmatmul.mubr.f32.gmra.mxu0 %v279
          %v396 = vpop.f32.mrf.mxu0
          %v397 = vadd.f32 %v269, %v396
          %v398 = vpop.f32.mrf.mxu0
          %399 = vmatprep.mubr.f32.mxu0 0.0
          %400 = vmatmul.mubr.f32.gmra.mxu0 %v282
          %v401 = vpop.f32.mrf.mxu0
          %v402 = vadd.f32 %v269, %v401
          %v403 = vpop.f32.mrf.mxu0
          %404 = vmatprep.mubr.f32.mxu0 0.0
          %405 = vmatmul.mubr.f32.gmra.mxu0 %v285
          %v406 = vpop.f32.mrf.mxu0
          %v407 = vadd.f32 %v269, %v406
          %v408 = vpop.f32.mrf.mxu0
          %409 = vmatprep.mubr.f32.mxu0 0.0
          %410 = vmatmul.mubr.f32.gmra.mxu0 %v288
          %v411 = vpop.f32.mrf.mxu0
          %v412 = vadd.f32 %v269, %v411
          %v413 = vpop.f32.mrf.mxu0
          %414 = vmatprep.mubr.f32.mxu0 0.0
          %415 = vmatmul.mubr.f32.gmra.mxu0 %v291
          %v416 = vpop.f32.mrf.mxu0
          %v417 = vadd.f32 %v269, %v416
          %v418 = vpop.f32.mrf.mxu0
          %419 = vmatprep.mubr.f32.mxu0 0.0
          %420 = vmatmul.mubr.f32.gmra.mxu0 %v294
          %v421 = vpop.f32.mrf.mxu0
          %v422 = vadd.f32 %v269, %v421
          %v423 = vpop.f32.mrf.mxu0
          %424 = vmatprep.mubr.f32.mxu0 0.0
          %425 = vmatmul.mubr.f32.gmra.mxu0 %v297
          %v426 = vpop.f32.mrf.mxu0
          %v427 = vadd.f32 %v269, %v426
          %v428 = vpop.f32.mrf.mxu0
          %429 = vmatprep.mubr.f32.mxu0 0.0
          %430 = vmatmul.mubr.f32.gmra.mxu0 %v300
          %v431 = vpop.f32.mrf.mxu0
          %v432 = vadd.f32 %v269, %v431
          %v433 = vpop.f32.mrf.mxu0
          %434 = vmatprep.mubr.f32.mxu0 0.0
          %435 = vmatmul.mubr.f32.gmra.mxu0 %v303
          %v436 = vpop.f32.mrf.mxu0
          %v437 = vadd.f32 %v269, %v436
          %v438 = vpop.f32.mrf.mxu0
          %439 = vmatprep.mubr.f32.mxu0 0.0
          %440 = vmatmul.mubr.f32.gmra.mxu0 %v306
          %v441 = vpop.f32.mrf.mxu0
          %v442 = vadd.f32 %v269, %v441
          %v443 = vpop.f32.mrf.mxu0
          %444 = vmatprep.mubr.f32.mxu0 0.0
          %445 = vmatmul.mubr.f32.gmra.mxu0 %v309
          %v446 = vpop.f32.mrf.mxu0
          %v447 = vadd.f32 %v269, %v446
          %v448 = vpop.f32.mrf.mxu0
          %449 = vmatprep.mubr.f32.mxu0 0.0
          %450 = vmatmul.mubr.f32.gmra.mxu0 %v312
          %v451 = vpop.f32.mrf.mxu0
          %v452 = vadd.f32 %v269, %v451
          %v453 = vpop.f32.mrf.mxu0
          %454 = vmatprep.mubr.f32.mxu0 0.0
          %455 = vmatmul.mubr.f32.gmra.mxu0 %v315
          %v456 = vpop.f32.mrf.mxu0
          %v457 = vadd.f32 %v269, %v456
          %v458 = vpop.f32.mrf.mxu0
          %459 = vmatprep.mubr.f32.mxu0 0.0
          %460 = vmatmul.mubr.f32.gmra.mxu0 %v318
          %v461 = vpop.f32.mrf.mxu0
          %v462 = vadd.f32 %v269, %v461
          %v463 = vpop.f32.mrf.mxu0
          %464 = vdwg.mxu0
          %v465 = vmul.f32 %v387, 0.5
          %v466 = vmul.f32 %v392, 0.5
          %v467 = vmul.f32 %v397, 0.5
          %v468 = vmul.f32 %v402, 0.5
          %v469 = vmul.f32 %v407, 0.5
          %v470 = vmul.f32 %v412, 0.5
          %v471 = vmul.f32 %v417, 0.5
          %v472 = vmul.f32 %v422, 0.5
          %v473 = vmul.f32 %v427, 0.5
          %v474 = vmul.f32 %v432, 0.5
          %v475 = vmul.f32 %v437, 0.5
          %v476 = vmul.f32 %v442, 0.5
          %v477 = vmul.f32 %v447, 0.5
          %v478 = vmul.f32 %v452, 0.5
          %v479 = vmul.f32 %v457, 0.5
          %v480 = vmul.f32 %v462, 0.5
          %v481 = vtanh.pop %v465
          %v482 = vtanh.pop %v466
          %v483 = vtanh.pop %v467
          %v484 = vtanh.pop %v468
          %v485 = vtanh.pop %v469
          %v486 = vtanh.pop %v470
          %v487 = vtanh.pop %v471
          %v488 = vtanh.pop %v472
          %v489 = vtanh.pop %v473
          %v490 = vtanh.pop %v474
          %v491 = vtanh.pop %v475
          %v492 = vtanh.pop %v476
          %v493 = vtanh.pop %v477
          %v494 = vtanh.pop %v478
          %v495 = vtanh.pop %v479
          %v496 = vtanh.pop %v480
          %v497 = vadd.f32 %v481, 1.0
          %v498 = vadd.f32 %v482, 1.0
          %v499 = vadd.f32 %v483, 1.0
          %v500 = vadd.f32 %v484, 1.0
          %v501 = vadd.f32 %v485, 1.0
          %v502 = vadd.f32 %v486, 1.0
          %v503 = vadd.f32 %v487, 1.0
          %v504 = vadd.f32 %v488, 1.0
          %v505 = vadd.f32 %v489, 1.0
          %v506 = vadd.f32 %v490, 1.0
          %v507 = vadd.f32 %v491, 1.0
          %v508 = vadd.f32 %v492, 1.0
          %v509 = vadd.f32 %v493, 1.0
          %v510 = vadd.f32 %v494, 1.0
          %v511 = vadd.f32 %v495, 1.0
          %v512 = vadd.f32 %v496, 1.0
          %v513 = vmul.f32 %v497, 0.5
          %v514 = vmul.f32 %v498, 0.5
          %v515 = vmul.f32 %v499, 0.5
          %v516 = vmul.f32 %v500, 0.5
          %v517 = vmul.f32 %v501, 0.5
          %v518 = vmul.f32 %v502, 0.5
          %v519 = vmul.f32 %v503, 0.5
          %v520 = vmul.f32 %v504, 0.5
          %v521 = vmul.f32 %v505, 0.5
          %v522 = vmul.f32 %v506, 0.5
          %v523 = vmul.f32 %v507, 0.5
          %v524 = vmul.f32 %v508, 0.5
          %v525 = vmul.f32 %v509, 0.5
          %v526 = vmul.f32 %v510, 0.5
          %v527 = vmul.f32 %v511, 0.5
          %v528 = vmul.f32 %v512, 0.5
          %529 = vst [vmem:[#allocation2] sm:$0xff] %v513
          %530 = vst [vmem:[#allocation2 + $0x8] sm:$0xff] %v514
          %531 = vst [vmem:[#allocation2 + $0x10] sm:$0xff] %v515
          %532 = vst [vmem:[#allocation2 + $0x18] sm:$0xff] %v516
          %533 = vst [vmem:[#allocation2 + $0x20] sm:$0xff] %v517
          %534 = vst [vmem:[#allocation2 + $0x28] sm:$0xff] %v518
          %535 = vst [vmem:[#allocation2 + $0x30] sm:$0xff] %v519
          %536 = vst [vmem:[#allocation2 + $0x38] sm:$0xff] %v520
          %537 = vst [vmem:[#allocation2 + $0x40] sm:$0xff] %v521
          %538 = vst [vmem:[#allocation2 + $0x48] sm:$0xff] %v522
          %539 = vst [vmem:[#allocation2 + $0x50] sm:$0xff] %v523
          %540 = vst [vmem:[#allocation2 + $0x58] sm:$0xff] %v524
          %541 = vst [vmem:[#allocation2 + $0x60] sm:$0xff] %v525
          %542 = vst [vmem:[#allocation2 + $0x68] sm:$0xff] %v526
          %543 = vst [vmem:[#allocation2 + $0x70] sm:$0xff] %v527
          %544 = vst [vmem:[#allocation2 + $0x78] sm:$0xff] %v528
        $region44: #{tpu_custom_call.1} parent=39 // pred_fallthru
          _
        %v545 = vld [vmem:[#allocation2] sm:$0xff]
        %v546 = vld [vmem:[#allocation2 + $0x8] sm:$0xff]
        %v547 = vld [vmem:[#allocation2 + $0x10] sm:$0xff]
        %v548 = vld [vmem:[#allocation2 + $0x18] sm:$0xff]
        %v549 = vld [vmem:[#allocation2 + $0x20] sm:$0xff]
        %v550 = vld [vmem:[#allocation2 + $0x28] sm:$0xff]
        %v551 = vld [vmem:[#allocation2 + $0x30] sm:$0xff]
        %v552 = vld [vmem:[#allocation2 + $0x38] sm:$0xff]
        %v553 = vld [vmem:[#allocation2 + $0x40] sm:$0xff]
        %v554 = vld [vmem:[#allocation2 + $0x48] sm:$0xff]
        %v555 = vld [vmem:[#allocation2 + $0x50] sm:$0xff]
        %v556 = vld [vmem:[#allocation2 + $0x58] sm:$0xff]
        %v557 = vld [vmem:[#allocation2 + $0x60] sm:$0xff]
        %v558 = vld [vmem:[#allocation2 + $0x68] sm:$0xff]
        %v559 = vld [vmem:[#allocation2 + $0x70] sm:$0xff]
        %v560 = vld [vmem:[#allocation2 + $0x78] sm:$0xff]
        %v561 = vld [vmem:[%s3] sm:$0xff]
        %v562 = vld [vmem:[%s3 + $0x8] sm:$0xff]
        %v563 = vld [vmem:[%s3 + $0x10] sm:$0xff]
        %v564 = vld [vmem:[%s3 + $0x18] sm:$0xff]
        %v565 = vld [vmem:[%s3 + $0x20] sm:$0xff]
        %v566 = vld [vmem:[%s3 + $0x28] sm:$0xff]
        %v567 = vld [vmem:[%s3 + $0x30] sm:$0xff]
        %v568 = vld [vmem:[%s3 + $0x38] sm:$0xff]
        %v569 = vld [vmem:[%s3 + $0x40] sm:$0xff]
        %v570 = vld [vmem:[%s3 + $0x48] sm:$0xff]
        %v571 = vld [vmem:[%s3 + $0x50] sm:$0xff]
        %v572 = vld [vmem:[%s3 + $0x58] sm:$0xff]
        %v573 = vld [vmem:[%s3 + $0x60] sm:$0xff]
        %v574 = vld [vmem:[%s3 + $0x68] sm:$0xff]
        %v575 = vld [vmem:[%s3 + $0x70] sm:$0xff]
        %v576 = vld [vmem:[%s3 + $0x78] sm:$0xff]
        %v577 = vld [vmem:[%s4] sm:$0x1]
        %v579 = vlaneseq
        %v580 = vshrl.u32 %v579, 7
        %v581 = vsub.s32 0, %v580
        %v582 = vrot.slane %v577, %v581
        %584 = vmatprep.subr.mxu0 0.0
        %585 = vmatpush1.msra.mxu0 %v576
        %586 = vmatprep.subr.mxu0 0.0
        %587 = vmatpush1.msra.mxu0 %v575
        %588 = vmatprep.subr.mxu0 0.0
        %589 = vmatpush1.msra.mxu0 %v574
        %590 = vmatprep.subr.mxu0 0.0
        %591 = vmatpush1.msra.mxu0 %v573
        %592 = vmatprep.subr.mxu0 0.0
        %593 = vmatpush1.msra.mxu0 %v572
        %594 = vmatprep.subr.mxu0 0.0
        %595 = vmatpush1.msra.mxu0 %v571
        %596 = vmatprep.subr.mxu0 0.0
        %597 = vmatpush1.msra.mxu0 %v570
        %598 = vmatprep.subr.mxu0 0.0
        %599 = vmatpush1.msra.mxu0 %v569
        %600 = vmatprep.subr.mxu0 0.0
        %601 = vmatpush1.msra.mxu0 %v568
        %602 = vmatprep.subr.mxu0 0.0
        %603 = vmatpush1.msra.mxu0 %v567
        %604 = vmatprep.subr.mxu0 0.0
        %605 = vmatpush1.msra.mxu0 %v566
        %606 = vmatprep.subr.mxu0 0.0
        %607 = vmatpush1.msra.mxu0 %v565
        %608 = vmatprep.subr.mxu0 0.0
        %609 = vmatpush1.msra.mxu0 %v564
        %610 = vmatprep.subr.mxu0 0.0
        %611 = vmatpush1.msra.mxu0 %v563
        %612 = vmatprep.subr.mxu0 0.0
        %613 = vmatpush1.msra.mxu0 %v562
        %614 = vmatprep.subr.mxu0 0.0
        %615 = vmatpush1.msra.mxu0 %v561
        %616 = vmatprep.subr.mxu0 0.0
        %617 = vmatpush2.msra.mxu0 0.0
        %618 = vmatprep.subr.mxu0 0.0
        %619 = vmatpush2.msra.mxu0 0.0
        %620 = vmatprep.subr.mxu0 0.0
        %621 = vmatpush2.msra.mxu0 0.0
        %622 = vmatprep.subr.mxu0 0.0
        %623 = vmatpush2.msra.mxu0 0.0
        %624 = vmatprep.subr.mxu0 0.0
        %625 = vmatpush2.msra.mxu0 0.0
        %626 = vmatprep.subr.mxu0 0.0
        %627 = vmatpush2.msra.mxu0 0.0
        %628 = vmatprep.subr.mxu0 0.0
        %629 = vmatpush2.msra.mxu0 0.0
        %630 = vmatprep.subr.mxu0 0.0
        %631 = vmatpush2.msra.mxu0 0.0
        %632 = vmatprep.subr.mxu0 0.0
        %633 = vmatpush2.msra.mxu0 0.0
        %634 = vmatprep.subr.mxu0 0.0
        %635 = vmatpush2.msra.mxu0 0.0
        %636 = vmatprep.subr.mxu0 0.0
        %637 = vmatpush2.msra.mxu0 0.0
        %638 = vmatprep.subr.mxu0 0.0
        %639 = vmatpush2.msra.mxu0 0.0
        %640 = vmatprep.subr.mxu0 0.0
        %641 = vmatpush2.msra.mxu0 0.0
        %642 = vmatprep.subr.mxu0 0.0
        %643 = vmatpush2.msra.mxu0 0.0
        %644 = vmatprep.subr.mxu0 0.0
        %645 = vmatpush2.msra.mxu0 0.0
        %646 = vmatprep.subr.mxu0 0.0
        %647 = vmatpush2.msra.mxu0 0.0
        %648 = vmatprep.mubr.f32.mxu0 0.0
        %649 = vmatmul.mubr.f32.gmra.mxu0 %v545
        %v650 = vpop.f32.mrf.mxu0
        %v651 = vadd.f32 %v582, %v650
        %v652 = vpop.f32.mrf.mxu0
        %653 = vmatprep.mubr.f32.mxu0 0.0
        %654 = vmatmul.mubr.f32.gmra.mxu0 %v546
        %v655 = vpop.f32.mrf.mxu0
        %v656 = vadd.f32 %v582, %v655
        %v657 = vpop.f32.mrf.mxu0
        %658 = vmatprep.mubr.f32.mxu0 0.0
        %659 = vmatmul.mubr.f32.gmra.mxu0 %v547
        %v660 = vpop.f32.mrf.mxu0
        %v661 = vadd.f32 %v582, %v660
        %v662 = vpop.f32.mrf.mxu0
        %663 = vmatprep.mubr.f32.mxu0 0.0
        %664 = vmatmul.mubr.f32.gmra.mxu0 %v548
        %v665 = vpop.f32.mrf.mxu0
        %v666 = vadd.f32 %v582, %v665
        %v667 = vpop.f32.mrf.mxu0
        %668 = vmatprep.mubr.f32.mxu0 0.0
        %669 = vmatmul.mubr.f32.gmra.mxu0 %v549
        %v670 = vpop.f32.mrf.mxu0
        %v671 = vadd.f32 %v582, %v670
        %v672 = vpop.f32.mrf.mxu0
        %673 = vmatprep.mubr.f32.mxu0 0.0
        %674 = vmatmul.mubr.f32.gmra.mxu0 %v550
        %v675 = vpop.f32.mrf.mxu0
        %v676 = vadd.f32 %v582, %v675
        %v677 = vpop.f32.mrf.mxu0
        %678 = vmatprep.mubr.f32.mxu0 0.0
        %679 = vmatmul.mubr.f32.gmra.mxu0 %v551
        %v680 = vpop.f32.mrf.mxu0
        %v681 = vadd.f32 %v582, %v680
        %v682 = vpop.f32.mrf.mxu0
        %683 = vmatprep.mubr.f32.mxu0 0.0
        %684 = vmatmul.mubr.f32.gmra.mxu0 %v552
        %v685 = vpop.f32.mrf.mxu0
        %v686 = vadd.f32 %v582, %v685
        %v687 = vpop.f32.mrf.mxu0
        %688 = vmatprep.mubr.f32.mxu0 0.0
        %689 = vmatmul.mubr.f32.gmra.mxu0 %v553
        %v690 = vpop.f32.mrf.mxu0
        %v691 = vadd.f32 %v582, %v690
        %v692 = vpop.f32.mrf.mxu0
        %693 = vmatprep.mubr.f32.mxu0 0.0
        %694 = vmatmul.mubr.f32.gmra.mxu0 %v554
        %v695 = vpop.f32.mrf.mxu0
        %v696 = vadd.f32 %v582, %v695
        %v697 = vpop.f32.mrf.mxu0
        %698 = vmatprep.mubr.f32.mxu0 0.0
        %699 = vmatmul.mubr.f32.gmra.mxu0 %v555
        %v700 = vpop.f32.mrf.mxu0
        %v701 = vadd.f32 %v582, %v700
        %v702 = vpop.f32.mrf.mxu0
        %703 = vmatprep.mubr.f32.mxu0 0.0
        %704 = vmatmul.mubr.f32.gmra.mxu0 %v556
        %v705 = vpop.f32.mrf.mxu0
        %v706 = vadd.f32 %v582, %v705
        %v707 = vpop.f32.mrf.mxu0
        %708 = vmatprep.mubr.f32.mxu0 0.0
        %709 = vmatmul.mubr.f32.gmra.mxu0 %v557
        %v710 = vpop.f32.mrf.mxu0
        %v711 = vadd.f32 %v582, %v710
        %v712 = vpop.f32.mrf.mxu0
        %713 = vmatprep.mubr.f32.mxu0 0.0
        %714 = vmatmul.mubr.f32.gmra.mxu0 %v558
        %v715 = vpop.f32.mrf.mxu0
        %v716 = vadd.f32 %v582, %v715
        %v717 = vpop.f32.mrf.mxu0
        %718 = vmatprep.mubr.f32.mxu0 0.0
        %719 = vmatmul.mubr.f32.gmra.mxu0 %v559
        %v720 = vpop.f32.mrf.mxu0
        %v721 = vadd.f32 %v582, %v720
        %v722 = vpop.f32.mrf.mxu0
        %723 = vmatprep.mubr.f32.mxu0 0.0
        %724 = vmatmul.mubr.f32.gmra.mxu0 %v560
        %v725 = vpop.f32.mrf.mxu0
        %v726 = vadd.f32 %v582, %v725
        %v727 = vpop.f32.mrf.mxu0
        %728 = vdwg.mxu0
        %729 = vst [vmem:[%s232] sm:$0xff] %v651
        %730 = vst [vmem:[%s232 + $0x8] sm:$0xff] %v656
        %731 = vst [vmem:[%s232 + $0x10] sm:$0xff] %v661
        %732 = vst [vmem:[%s232 + $0x18] sm:$0xff] %v666
        %733 = vst [vmem:[%s232 + $0x20] sm:$0xff] %v671
        %734 = vst [vmem:[%s232 + $0x28] sm:$0xff] %v676
        %735 = vst [vmem:[%s232 + $0x30] sm:$0xff] %v681
        %736 = vst [vmem:[%s232 + $0x38] sm:$0xff] %v686
        %737 = vst [vmem:[%s232 + $0x40] sm:$0xff] %v691
        %738 = vst [vmem:[%s232 + $0x48] sm:$0xff] %v696
        %739 = vst [vmem:[%s232 + $0x50] sm:$0xff] %v701
        %740 = vst [vmem:[%s232 + $0x58] sm:$0xff] %v706
        %741 = vst [vmem:[%s232 + $0x60] sm:$0xff] %v711
        %742 = vst [vmem:[%s232 + $0x68] sm:$0xff] %v716
        %743 = vst [vmem:[%s232 + $0x70] sm:$0xff] %v721
        %744 = vst [vmem:[%s232 + $0x78] sm:$0xff] %v726
        %s745 = sand.u32 %s151, 1
        %s746 = scalar_lea.sflag [#allocation4], %s745
        %s747 = sand.u32 %s151, 1
        %s748 = smul.addr %s747, 128
        %s749 = scalar_lea.vmem [#allocation3], %s748
        // Predicated region
        $region45: #{tpu_custom_call.1} parent=39 // pred_check
          %p750 = pneg %p161
        $region46: #{tpu_custom_call.1} parent=39 // pred_check_branch
          %752 = sbr.rel (%p750) target = $region48
        $region47: #{tpu_custom_call.1} parent=39 // pred_region
          %s753 = smul.u32 16, %s23
          %s755 = ssub.s32 2048, 2048
          %756 = vsyncadd %s746, %s755
          %s757 = sadd.s32 %s24, %s753
          %s758 = smul.addr %s757, 128
          %s759 = scalar_lea.hbm %s5, %s758
          %s760 = sshll.u32 %s749, 4
          %s761 = int_to_ptr.vmem [resolvable:$true] %s760
          %766 = dma.vmem_to_hbm [thread:$0]  %s761, 2048, %s759, %s746, 128, 128, 8
        $region48: #{tpu_custom_call.1} parent=39 // pred_fallthru
          _
      $region40: #{tpu_custom_call.1} parent=5 // pred_fallthru
        _
      %p767 = scmp.le.s32.totalorder 2, %s14
      // Predicated region
      $region49: #{tpu_custom_call.1} parent=5 // pred_check
        %p768 = pneg %p767
      $region50: #{tpu_custom_call.1} parent=5 // pred_check_branch
        %770 = sbr.rel (%p768) target = $region52
      $region51: #{tpu_custom_call.1} parent=5 // pred_region
        %s771 = ssub.s32 %s14, 2
        // Predicated region
        $region53: #{tpu_custom_call.1} parent=51 // pred_check
          %p772 = pneg %p167
        $region54: #{tpu_custom_call.1} parent=51 // pred_check_branch
          %774 = sbr.rel (%p772) target = $region56
        $region55: #{tpu_custom_call.1} parent=51 // pred_region
          %s775 = sand.u32 %s152, 1
          %s776 = scalar_lea.sflag [#allocation4], %s775
          %s777 = sand.u32 %s152, 1
          %s778 = smul.addr %s777, 128
          %s779 = scalar_lea.vmem [#allocation3], %s778
          %780 = dma.done %s776, 2048
        $region56: #{tpu_custom_call.1} parent=51 // pred_fallthru
          _
      $region52: #{tpu_custom_call.1} parent=5 // pred_fallthru
        _
    $region6: #{tpu_custom_call.1} parent=1 // loop_footer
      %s18 = sadd.s32 1, %s14
    $region7: #{tpu_custom_call.1} parent=1 // loop_footer_branch
      %13 = sbr.rel target = $region3
    $region8: #{tpu_custom_call.1} parent=1 // loop_exit
      _
    %781 = vsyncpa [#allocation4], 1
    %s782 = scalar_lea.sflag [#allocation4], 1
    %783 = vsyncpa %s782, 1

</llo_original>
